<compile_context>
chip_gen: v7x
topology: tpu7x:2x2x1
jax: 0.10.0
libtpu: 0.0.40
codegen_flags: <defaults>
</compile_context>

<pallas_src>
import functools

import jax
import jax.numpy as jnp
from jax.experimental import pallas as pl
from jax.experimental.pallas import tpu as pltpu


def _round_up(x, m):
    return ((x + m - 1) // m) * m


def _mlp_kernel(x_ref, wu_ref, wd_ref, o_ref):
    # x_ref:  (TM, H)   f32 tile of flattened input rows
    # wu_ref: (2H, H)   bf16 up_proj weight, PyTorch (out, in) layout, resident
    # wd_ref: (H, 2H)   bf16 down_proj weight, PyTorch (out, in) layout, resident
    # o_ref:  (TM, H)   output tile
    x = x_ref[...].astype(jnp.bfloat16)
    # up_proj: contract x's H axis with w_up's "in" axis (axis 1) -> (TM, 2H).
    h = jax.lax.dot_general(
        x, wu_ref[...],
        dimension_numbers=(((1,), (1,)), ((), ())),
        preferred_element_type=jnp.float32)
    h = jnp.maximum(h, 0.0)  # ReLU (f32)
    # down_proj: (TM, 2H) x (H, 2H), contracting axis 1 of both -> (TM, H).
    out = jax.lax.dot_general(
        h.astype(jnp.bfloat16), wd_ref[...],
        dimension_numbers=(((1,), (1,)), ((), ())),
        preferred_element_type=jnp.float32)
    o_ref[...] = out.astype(o_ref.dtype)


@functools.partial(jax.jit, static_argnames=("tile_m",))
def simple_mlp_forward(x, w_up, w_down, *, tile_m=512):
    """Pallas equivalent of SimpleMLP.forward (down(relu(up(x)))).

    x:      (..., H)   float32
    w_up:   (2H, H)    PyTorch Linear weight layout (out_features, in_features)
    w_down: (H, 2H)    PyTorch Linear weight layout
    """
    orig_shape = x.shape
    H = orig_shape[-1]
    H2 = 2 * H
    x2d = x.reshape(-1, H)
    M = x2d.shape[0]

    # Row tile: take the largest tile <= tile_m that is sublane-aligned; pad
    # ragged M instead of asserting (padded rows are sliced off after the call).
    tile_m_eff = min(tile_m, _round_up(M, 8))
    M_pad = _round_up(M, tile_m_eff)
    if M_pad != M:
        x2d = jnp.pad(x2d, ((0, M_pad - M), (0, 0)))

    # bf16 weights for MXU peak (accumulation stays f32 inside the kernel).
    # In a real model these casts would be done once at init, not per call.
    w_up_bf = w_up.astype(jnp.bfloat16)      # (2H, H)
    w_down_bf = w_down.astype(jnp.bfloat16)  # (H, 2H)

    grid = (M_pad // tile_m_eff,)

    # VMEM budget: double-buffered x/out tiles + double-buffered resident bf16
    # weights + the (TM, 2H) f32 matmul intermediate, plus headroom.  Clamped
    # to 64 MiB so the limit is valid on v7x as well as v5e/v6e.
    vmem_bytes = (
        2 * tile_m_eff * H * 4          # x tiles (f32, double-buffered)
        + 2 * tile_m_eff * H * 4        # out tiles (f32, double-buffered)
        + 2 * 2 * (H2 * H * 2)          # both weights, bf16, double-buffered
        + tile_m_eff * H2 * 4           # (TM, 2H) f32 intermediate
        + (4 << 20))                    # headroom
    vmem_limit = int(min(max(vmem_bytes, 32 << 20), 64 << 20))
    # TODO(synk): for H large enough that resident bf16 weights exceed ~64 MiB
    # (v7x), tile the 2H axis as an innermost "arbitrary" grid dim with an
    # f32 accumulator scratch + pl.when init/finalize instead of residency.

    flops = 2 * 2 * M_pad * H * H2                 # two matmuls
    bytes_accessed = (M_pad * H * 4 * 2            # x in + out (f32)
                      + 2 * H2 * H * 2)            # both bf16 weights

    out = pl.pallas_call(
        _mlp_kernel,
        out_shape=jax.ShapeDtypeStruct((M_pad, H), x.dtype),
        grid_spec=pltpu.PrefetchScalarGridSpec(
            num_scalar_prefetch=0,
            grid=grid,
            in_specs=[
                pl.BlockSpec((tile_m_eff, H), lambda i: (i, 0)),
                # Weights have a constant block index: fetched once, resident
                # in VMEM for every grid step.
                pl.BlockSpec((H2, H), lambda i: (0, 0)),
                pl.BlockSpec((H, H2), lambda i: (0, 0)),
            ],
            out_specs=pl.BlockSpec((tile_m_eff, H), lambda i: (i, 0)),
        ),
        compiler_params=pltpu.CompilerParams(
            dimension_semantics=("parallel",),   # shards M across TCs on v7x
            vmem_limit_bytes=vmem_limit),
        cost_estimate=pl.CostEstimate(
            flops=flops, transcendentals=0, bytes_accessed=bytes_accessed),
    )(x2d, w_up_bf, w_down_bf)

    if M_pad != M:
        out = out[:M]
    return out.reshape(orig_shape)


if __name__ == "__main__":
    # Small deterministic setup: batch=2, seq=8, hidden=32.
    # (Note: production hidden sizes should be multiples of 128 for lane-dense
    #  stores; H=32 here only to match the unit-test scale.)
    batch, seq, hidden = 2, 8, 32
    key = jax.random.PRNGKey(0)
    kx, ku, kd = jax.random.split(key, 3)

    x = jax.random.normal(kx, (batch, seq, hidden), dtype=jnp.float32)
    # PyTorch Linear(hidden, 2*hidden, bias=False).weight has shape (2H, H)
    w_up = jax.random.normal(ku, (2 * hidden, hidden), dtype=jnp.float32) * 0.05
    # PyTorch Linear(2*hidden, hidden, bias=False).weight has shape (H, 2H)
    w_down = jax.random.normal(kd, (hidden, 2 * hidden), dtype=jnp.float32) * 0.05

    out = simple_mlp_forward(x, w_up, w_down)
    jax.block_until_ready(out)

    # Pure-JAX f32 reference; tolerance loosened for bf16 matmul operands.
    ref = jnp.maximum(x @ w_up.T, 0.0) @ w_down.T
    assert out.shape == x.shape
    assert jnp.allclose(out, ref, atol=2e-2, rtol=2e-2), "mismatch vs reference"

    print("KERNEL_OK")
</pallas_src>

<mosaic_0001>
module attributes {stable_mosaic.version = 11 : i64} {
  func.func @_mlp_kernel(%arg0: i32, %arg1: memref<16x32xf32, #tpu.memory_space<vmem>>, %arg2: memref<64x32xbf16, #tpu.memory_space<vmem>>, %arg3: memref<32x64xbf16, #tpu.memory_space<vmem>>, %arg4: memref<16x32xf32, #tpu.memory_space<vmem>>) attributes {dimension_semantics = [#tpu.dimension_semantics<parallel>], iteration_bounds = array<i64: 1>, scalar_prefetch = 0 : i64, scratch_operands = 0 : i64, tpu.core_type = #tpu.core_type<tc>, window_params = [{transform_indices = @transform_0, window_bounds = array<i64: 16, 32>}, {pipeline_mode = #tpu.pipeline_mode<synchronous>, transform_indices = @transform_1, window_bounds = array<i64: 64, 32>}, {pipeline_mode = #tpu.pipeline_mode<synchronous>, transform_indices = @transform_2, window_bounds = array<i64: 32, 64>}, {transform_indices = @transform_3, window_bounds = array<i64: 16, 32>}]} {
    %c0 = arith.constant 0 : index
    %c0_0 = arith.constant 0 : index
    %0 = vector.load %arg1[%c0, %c0_0] : memref<16x32xf32, #tpu.memory_space<vmem>>, vector<16x32xf32>
    %1 = arith.truncf %0 : vector<16x32xf32> to vector<16x32xbf16>
    %c0_1 = arith.constant 0 : index
    %c0_2 = arith.constant 0 : index
    %2 = vector.load %arg2[%c0_1, %c0_2] : memref<64x32xbf16, #tpu.memory_space<vmem>>, vector<64x32xbf16>
    %cst = arith.constant dense<0.000000e+00> : vector<16x64xf32>
    %3 = tpu.matmul %1, %2, %cst {dimension_numbers = #tpu.dot_dimension_numbers<[1], [1], [0], [0], [0, 0, 1, 0], [], []>} : vector<16x32xbf16>, vector<64x32xbf16>, vector<16x64xf32> -> vector<16x64xf32>
    %cst_3 = arith.constant 0.000000e+00 : f32
    %4 = vector.broadcast %cst_3 : f32 to vector<16x64xf32>
    %5 = arith.maximumf %3, %4 : vector<16x64xf32>
    %6 = arith.truncf %5 : vector<16x64xf32> to vector<16x64xbf16>
    %c0_4 = arith.constant 0 : index
    %c0_5 = arith.constant 0 : index
    %7 = vector.load %arg3[%c0_4, %c0_5] : memref<32x64xbf16, #tpu.memory_space<vmem>>, vector<32x64xbf16>
    %cst_6 = arith.constant dense<0.000000e+00> : vector<16x32xf32>
    %8 = tpu.matmul %6, %7, %cst_6 {dimension_numbers = #tpu.dot_dimension_numbers<[1], [1], [0], [0], [0, 0, 1, 0], [], []>} : vector<16x64xbf16>, vector<32x64xbf16>, vector<16x32xf32> -> vector<16x32xf32>
    %c0_7 = arith.constant 0 : index
    %c0_8 = arith.constant 0 : index
    %9 = vector.load %arg4[%c0_7, %c0_8] : memref<16x32xf32, #tpu.memory_space<vmem>>, vector<16x32xf32>
    tpu.vector_store %arg4[%c0_7, %c0_8], %8 {strides = array<i32>} : memref<16x32xf32, #tpu.memory_space<vmem>>, vector<16x32xf32>,
    return
  }
  func.func @transform_0(%arg0: i32) -> (i32, i32) {
    %c0_i32 = arith.constant 0 : i32
    %c0_i32_0 = arith.constant 0 : i32
    return %arg0, %c0_i32 : i32, i32
  }
  func.func @transform_1(%arg0: i32) -> (i32, i32) {
    %c0_i32 = arith.constant 0 : i32
    %c0_i32_0 = arith.constant 0 : i32
    %c0_i32_1 = arith.constant 0 : i32
    return %c0_i32, %c0_i32_0 : i32, i32
  }
  func.func @transform_2(%arg0: i32) -> (i32, i32) {
    %c0_i32 = arith.constant 0 : i32
    %c0_i32_0 = arith.constant 0 : i32
    %c0_i32_1 = arith.constant 0 : i32
    return %c0_i32, %c0_i32_0 : i32, i32
  }
  func.func @transform_3(%arg0: i32) -> (i32, i32) {
    %c0_i32 = arith.constant 0 : i32
    %c0_i32_0 = arith.constant 0 : i32
    return %arg0, %c0_i32 : i32, i32
  }
}

</mosaic_0001>

<llo_original>
// kernel: simple_mlp_forward.1
$region0: #{simple_mlp_forward.1}
  #allocation0 [shape = 'u32[]', space=smem, size = 0x4, offset = 0x4, fixed_abs, tag = 'smem constant byte address 0x4 - core index']
  #allocation1 [shape = 'u32[144,128]{1,0:T(1,128)}', space=vmem, size = 0x12000, scoped, tag = 'internal scratch']
  %s0 = inlined_call_operand.vmem [shape: f32[16,32], index: 0, kind: input, shape index: {}]
  %s1 = inlined_call_operand.vmem [shape: bf16[64,32], index: 1, kind: input, shape index: {}]
  %s2 = inlined_call_operand.vmem [shape: bf16[32,64], index: 2, kind: input, shape index: {}]
  %s3 = inlined_call_operand.hbm [shape: f32[16,32], index: 3, kind: output, shape index: {}]
  %s4 = sld [smem:[#allocation0]]
  $region22: #{simple_mlp_forward.1} parent=0
    _
  %s6 = ssub.s32 1, %s4
  %s7 = scalar_select 0, %s6, %s4
  $region1: #{simple_mlp_forward.1} parent=0
    #allocation2 [shape = 'u8[8192]{0}', space=vmem, size = 0x2000, scoped, tag = 'output window, operand 0, single buffered']
    #allocation3 [shape = 's32[1]{0}', space=sflag, size = 0x4, scoped, tag = 'scoped memory for simple_mlp_forward.1']
    %8 = vsyncpa [#allocation3], 0
    // Predicated region
    $region2: #{simple_mlp_forward.1} parent=1 // pred_check
      _
    $region3: #{simple_mlp_forward.1} parent=1 // pred_check_branch
      %10 = sbr.rel (0) target = $region5
    $region4: #{simple_mlp_forward.1} parent=1 // pred_region
      _
    $region5: #{simple_mlp_forward.1} parent=1 // pred_fallthru
      _
    // Predicated region
    $region6: #{simple_mlp_forward.1} parent=1 // pred_check
      _
    $region7: #{simple_mlp_forward.1} parent=1 // pred_check_branch
      %12 = sbr.rel (0) target = $region9
    $region8: #{simple_mlp_forward.1} parent=1 // pred_region
      _
    $region9: #{simple_mlp_forward.1} parent=1 // pred_fallthru
      _
    // Predicated region
    $region10: #{simple_mlp_forward.1} parent=1 // pred_check
      _
    $region11: #{simple_mlp_forward.1} parent=1 // pred_check_branch
      %14 = sbr.rel (0) target = $region13
    $region12: #{simple_mlp_forward.1} parent=1 // pred_region
      _
    $region13: #{simple_mlp_forward.1} parent=1 // pred_fallthru
      _
    %v16 = vld [vmem:[%s0] sm:$0xff]
    %v17 = vld [vmem:[%s0 + $0x8] sm:$0xff]
    %v18 = vpack.c.bf16 %v17, %v16
    %v19 = vld [vmem:[%s1] sm:$0xf]
    %v20 = vld [vmem:[%s1 + $0x4] sm:$0xf]
    %v21 = vld [vmem:[%s1 + $0x8] sm:$0xf]
    %v22 = vld [vmem:[%s1 + $0xc] sm:$0xf]
    %v23 = vld [vmem:[%s1 + $0x10] sm:$0xf]
    %v24 = vld [vmem:[%s1 + $0x14] sm:$0xf]
    %v25 = vld [vmem:[%s1 + $0x18] sm:$0xf]
    %v26 = vld [vmem:[%s1 + $0x1c] sm:$0xf]
    %v35 = vunpack.c.l.b16 %v19
    %v36 = vunpack.c.l.b16 %v20
    %v37 = vunpack.c.l.b16 %v21
    %v38 = vunpack.c.l.b16 %v22
    %v39 = vunpack.c.l.b16 %v23
    %v40 = vunpack.c.l.b16 %v24
    %v41 = vunpack.c.l.b16 %v25
    %v42 = vunpack.c.l.b16 %v26
    %v43 = vpack.c.b16 %v36, %v35
    %v44 = vpack.c.b16 %v38, %v37
    %v45 = vpack.c.b16 %v40, %v39
    %v46 = vpack.c.b16 %v42, %v41
    %vm47 = vcmask 261120
    %v49 = vsel %vm47, %v18, 0
    %v52 = vsel %vm47, %v43, 0
    %v55 = vsel %vm47, %v44, 0
    %v58 = vsel %vm47, %v45, 0
    %v61 = vsel %vm47, %v46, 0
    %63 = vmatprep.subr.bf16.mxu0 0
    %64 = vmatpush1.bf16.xpose.msra.mxu0 %v52
    %65 = vmatprep.subr.bf16.mxu0 0
    %66 = vmatpush1.bf16.xpose.msra.mxu0 %v55
    %67 = vmatprep.subr.bf16.mxu0 0
    %68 = vmatpush1.bf16.xpose.msra.mxu0 %v58
    %69 = vmatprep.subr.bf16.mxu0 0
    %70 = vmatpush1.bf16.xpose.msra.mxu0 %v61
    %71 = vmatprep.subr.bf16.mxu0 0
    %72 = vmatpush1.bf16.xpose.msra.mxu0 0
    %73 = vmatprep.subr.bf16.mxu0 0
    %74 = vmatpush1.bf16.xpose.msra.mxu0 0
    %75 = vmatprep.subr.bf16.mxu0 0
    %76 = vmatpush1.bf16.xpose.msra.mxu0 0
    %77 = vmatprep.subr.bf16.mxu0 0
    %78 = vmatpush1.bf16.xpose.msra.mxu0 0
    %79 = vmatprep.subr.bf16.mxu0 0
    %80 = vmatpush1.bf16.xpose.msra.mxu0 0
    %81 = vmatprep.subr.bf16.mxu0 0
    %82 = vmatpush1.bf16.xpose.msra.mxu0 0
    %83 = vmatprep.subr.bf16.mxu0 0
    %84 = vmatpush1.bf16.xpose.msra.mxu0 0
    %85 = vmatprep.subr.bf16.mxu0 0
    %86 = vmatpush1.bf16.xpose.msra.mxu0 0
    %87 = vmatprep.subr.bf16.mxu0 0
    %88 = vmatpush1.bf16.xpose.msra.mxu0 0
    %89 = vmatprep.subr.bf16.mxu0 0
    %90 = vmatpush1.bf16.xpose.msra.mxu0 0
    %91 = vmatprep.subr.bf16.mxu0 0
    %92 = vmatpush1.bf16.xpose.msra.mxu0 0
    %93 = vmatprep.subr.bf16.mxu0 0
    %94 = vmatpush1.bf16.xpose.msra.mxu0 0
    %95 = vmatprep.mubr.bf16.mxu0 0
    %96 = vmatmul.mubr.bf16.gmra.mrb[0].mxu0 %v49
    %v97 = vpop.f32.mrb[0].mxu0
    %v98 = vadd.f32 0.0, %v97
    %v99 = vpop.f32.mrb[0].mxu0
    %v100 = vpop.f32.mrb[0].mxu0
    %v101 = vadd.f32 0.0, %v100
    %v102 = vpop.f32.mrb[0].mxu0
    %103 = vdwg.mxu0
    %v104 = vmax.f32 %v98, 0.0
    %v105 = vmax.f32 %v101, 0.0
    %v106 = vpack.c.bf16 %v105, %v104
    %v107 = vld [vmem:[%s2] sm:$0xf]
    %v108 = vld [vmem:[%s2 + $0x4] sm:$0xf]
    %v109 = vld [vmem:[%s2 + $0x8] sm:$0xf]
    %v110 = vld [vmem:[%s2 + $0xc] sm:$0xf]
    %v115 = vunpack.c.l.b16 %v107
    %v116 = vunpack.c.l.b16 %v108
    %v117 = vunpack.c.l.b16 %v109
    %v118 = vunpack.c.l.b16 %v110
    %v119 = vpack.c.b16 %v116, %v115
    %v120 = vpack.c.b16 %v118, %v117
    %vm121 = vcmask 523264
    %v123 = vsel %vm121, %v106, 0
    %v126 = vsel %vm121, %v119, 0
    %v129 = vsel %vm121, %v120, 0
    %131 = vmatprep.subr.bf16.mxu0 0
    %132 = vmatpush1.bf16.xpose.msra.mxu0 %v126
    %133 = vmatprep.subr.bf16.mxu0 0
    %134 = vmatpush1.bf16.xpose.msra.mxu0 %v129
    %135 = vmatprep.subr.bf16.mxu0 0
    %136 = vmatpush1.bf16.xpose.msra.mxu0 0
    %137 = vmatprep.subr.bf16.mxu0 0
    %138 = vmatpush1.bf16.xpose.msra.mxu0 0
    %139 = vmatprep.subr.bf16.mxu0 0
    %140 = vmatpush1.bf16.xpose.msra.mxu0 0
    %141 = vmatprep.subr.bf16.mxu0 0
    %142 = vmatpush1.bf16.xpose.msra.mxu0 0
    %143 = vmatprep.subr.bf16.mxu0 0
    %144 = vmatpush1.bf16.xpose.msra.mxu0 0
    %145 = vmatprep.subr.bf16.mxu0 0
    %146 = vmatpush1.bf16.xpose.msra.mxu0 0
    %147 = vmatprep.subr.bf16.mxu0 0
    %148 = vmatpush1.bf16.xpose.msra.mxu0 0
    %149 = vmatprep.subr.bf16.mxu0 0
    %150 = vmatpush1.bf16.xpose.msra.mxu0 0
    %151 = vmatprep.subr.bf16.mxu0 0
    %152 = vmatpush1.bf16.xpose.msra.mxu0 0
    %153 = vmatprep.subr.bf16.mxu0 0
    %154 = vmatpush1.bf16.xpose.msra.mxu0 0
    %155 = vmatprep.subr.bf16.mxu0 0
    %156 = vmatpush1.bf16.xpose.msra.mxu0 0
    %157 = vmatprep.subr.bf16.mxu0 0
    %158 = vmatpush1.bf16.xpose.msra.mxu0 0
    %159 = vmatprep.subr.bf16.mxu0 0
    %160 = vmatpush1.bf16.xpose.msra.mxu0 0
    %161 = vmatprep.subr.bf16.mxu0 0
    %162 = vmatpush1.bf16.xpose.msra.mxu0 0
    %163 = vmatprep.mubr.bf16.mxu0 0
    %164 = vmatmul.mubr.bf16.gmra.mrb[0].mxu0 %v123
    %v165 = vpop.f32.mrb[0].mxu0
    %v166 = vadd.f32 0.0, %v165
    %v167 = vpop.f32.mrb[0].mxu0
    %v168 = vpop.f32.mrb[0].mxu0
    %v169 = vadd.f32 0.0, %v168
    %v170 = vpop.f32.mrb[0].mxu0
    %171 = vdwg.mxu0
    %172 = vst.msk [vmem:[#allocation2] sm:$0xff] %vm47, %v166
    %173 = vst.msk [vmem:[#allocation2 + $0x8] sm:$0xff] %vm47, %v169
    // Predicated region
    $region14: #{simple_mlp_forward.1} parent=1 // pred_check
      _
    $region15: #{simple_mlp_forward.1} parent=1 // pred_check_branch
      %175 = sbr.rel (0) target = $region17
    $region16: #{simple_mlp_forward.1} parent=1 // pred_region
      %s177 = ssub.s32 256, 256
      %178 = vsyncadd [#allocation3], %s177
      %s179 = sshll.u32 [#allocation2], 4
      %s180 = int_to_ptr.vmem [resolvable:$true] %s179
      %185 = dma.vmem_to_hbm [thread:$0]  %s180, 256, %s3, [#allocation3], 128, 128, 8
    $region17: #{simple_mlp_forward.1} parent=1 // pred_fallthru
      _
    // Predicated region
    $region18: #{simple_mlp_forward.1} parent=1 // pred_check
      _
    $region19: #{simple_mlp_forward.1} parent=1 // pred_check_branch
      %187 = sbr.rel (0) target = $region21
    $region20: #{simple_mlp_forward.1} parent=1 // pred_region
      %188 = dma.done [#allocation3], 256
    $region21: #{simple_mlp_forward.1} parent=1 // pred_fallthru
      _
    %189 = vsyncpa [#allocation3], 1

</llo_original>
